<compile_context>
chip_gen: v6e
topology: v6e:2x2x1
jax: 0.10.0
libtpu: 0.0.40
codegen_flags: <defaults>
</compile_context>

<pallas_src>
import jax
import jax.numpy as jnp
from jax.experimental import pallas as pl
from jax.experimental.pallas import tpu as pltpu

_MIB = 1024 * 1024


def _round_up(x: int, m: int) -> int:
    return ((x + m - 1) // m) * m


def _sublane_multiple(itemsize: int) -> int:
    # Packed sublane count: f32 -> 8, bf16 -> 16, int8/fp8 -> 32.
    return max(8, 32 // max(1, itemsize))


def _chip_config():
    """Returns (num_tensorcores, block-footprint budget, base vmem_limit)."""
    kind = ""
    try:
        kind = jax.devices()[0].device_kind.lower()
    except Exception:  # no device info available -> conservative defaults
        pass
    if "v7" in kind:
        # v7x: 2 TCs/chip, 64 MiB VMEM per TC, ~3.2 TB/s HBM.  Bigger blocks
        # amortize the ~0.35us/step pipeline overhead; leave VMEM headroom.
        return 2, 32 * _MIB, 48 * _MIB
    # v5e / v6e / unknown: 1 TC per chip, 128 MiB physical VMEM, but a small
    # scoped-VMEM default -> keep the double-buffered footprint modest and
    # raise the limit explicitly.
    return 1, 16 * _MIB, 32 * _MIB


def _crop_copy_kernel(x_ref, o_ref):
    # x_ref: (nc_t, h_in_blk, W); o_ref: (nc_t, h_out_blk, W_out).
    # Slices start at offset 0 -> no lane/sublane shift, just a cropped copy.
    _, h_blk, w_blk = o_ref.shape
    o_ref[...] = x_ref[:, :h_blk, :w_blk]


def _make_dma_crop_kernel(chunks, h_out, w_out):
    """HBM->HBM strided crop: one DMA per NC chunk, all in flight at once."""

    def kernel(x_hbm, o_hbm, sems):
        copies = []
        for idx, (start, size) in enumerate(chunks):
            cp = pltpu.make_async_copy(
                x_hbm.at[pl.ds(start, size), pl.ds(0, h_out), pl.ds(0, w_out)],
                o_hbm.at[pl.ds(start, size)],
                sems.at[idx],
            )
            cp.start()
            copies.append(cp)
        for cp in copies:
            cp.wait()

    return kernel


class SamePad2d:
    """JAX/Pallas port of fairseq's SamePad2d (NCHW)."""

    # Below this many bytes per cropped row, a strided HBM->HBM DMA is
    # row-overhead bound; stage through VMEM instead.
    _DMA_MIN_ROW_BYTES = 512

    def __init__(self, kernel_size: int):
        self.remove = 1 if kernel_size % 2 == 0 else 0

    def __call__(self, x: jax.Array) -> jax.Array:
        assert x.ndim == 4, "expected NCHW 4D input"
        if self.remove == 0:
            return x  # odd kernel_size: identity, no kernel launch

        n, c, h, w = x.shape
        h_out, w_out = h - self.remove, w - self.remove
        if n * c == 0 or h_out <= 0 or w_out <= 0:
            return jnp.zeros((n, c, max(h_out, 0), max(w_out, 0)), x.dtype)

        nc = n * c
        x_flat = x.reshape(nc, h, w)  # free metadata reshape
        itemsize = int(jnp.dtype(x.dtype).itemsize)
        in_bytes = nc * h * w * itemsize
        out_bytes = nc * h_out * w_out * itemsize
        cost = pl.CostEstimate(
            flops=0, transcendentals=0, bytes_accessed=in_bytes + out_bytes)

        if w_out * itemsize >= self._DMA_MIN_ROW_BYTES:
            try:
                out_flat = self._dma_crop(x_flat, h_out, w_out, cost)
                return out_flat.reshape(n, c, h_out, w_out)
            except Exception:
                # Defensive: fall back to the VMEM-staged path if this backend
                # rejects the HBM->HBM strided-DMA lowering.
                pass

        out_flat = self._vmem_crop(x_flat, h_out, w_out, itemsize, cost)
        return out_flat.reshape(n, c, h_out, w_out)

    # ---- DMA-only path: bypasses vregs/VMEM entirely --------------------
    def _dma_crop(self, x_flat, h_out, w_out, cost):
        nc, _, _ = x_flat.shape
        # A handful of concurrent DMAs is enough to saturate HBM bandwidth.
        nsplit = min(nc, 4)
        base, rem = divmod(nc, nsplit)
        chunks, start = [], 0
        for i in range(nsplit):
            size = base + (1 if i < rem else 0)
            chunks.append((start, size))
            start += size

        return pl.pallas_call(
            _make_dma_crop_kernel(tuple(chunks), h_out, w_out),
            out_shape=jax.ShapeDtypeStruct((nc, h_out, w_out), x_flat.dtype),
            in_specs=[pl.BlockSpec(memory_space=pl.ANY)],
            out_specs=pl.BlockSpec(memory_space=pl.ANY),
            scratch_shapes=[pltpu.SemaphoreType.DMA((nsplit,))],
            compiler_params=pltpu.CompilerParams(
                vmem_limit_bytes=16 * _MIB,  # no VMEM staging is needed
            ),
            cost_estimate=cost,
        )(x_flat)

    # ---- VMEM-staged path: small W / fallback ----------------------------
    def _vmem_crop(self, x_flat, h_out, w_out, itemsize, cost):
        nc, h, w = x_flat.shape
        num_tc, budget, base_vmem_limit = _chip_config()

        sub = _sublane_multiple(itemsize)
        w_pad = _round_up(w, 128)
        w_out_pad = _round_up(w_out, 128)

        # Padded, double-buffered footprint of one (input + output) block pair
        # holding a single channel with the full H extent.
        per_channel = 2 * (_round_up(h, sub) * w_pad
                           + _round_up(h_out, sub) * w_out_pad) * itemsize

        if per_channel <= budget:
            # Block as many channels as fit; keep the full H extent.
            nc_tile = max(1, min(nc, budget // per_channel))
            h_tile_in, h_tile_out, h_steps = h, h_out, 1
        else:
            # One channel per block is already too big: tile H as well.
            nc_tile = 1
            row_pair = 2 * (w_pad + w_out_pad) * itemsize
            h_tile = max(sub, (budget // row_pair) // sub * sub)
            if h_tile >= h_out:
                h_tile_in, h_tile_out, h_steps = h, h_out, 1
            else:
                h_tile_in = h_tile_out = h_tile
                h_steps = pl.cdiv(h_out, h_tile)

        nc_steps = pl.cdiv(nc, nc_tile)

        # v7x: two TensorCores share the parallel grid axes; keep the total
        # number of parallel steps even so neither core idles.  Single-TC
        # parts (v5e/v6e) keep one maximal block: no forced split.
        if num_tc == 2 and nc >= 2 and (nc_steps * h_steps) % 2 == 1:
            new_tile = pl.cdiv(nc, nc_steps + 1)
            new_steps = pl.cdiv(nc, new_tile)
            if (new_steps * h_steps) % 2 == 0:
                nc_tile, nc_steps = new_tile, new_steps

        # Actual padded, double-buffered footprint of the chosen blocks; make
        # sure the scoped VMEM limit covers it with headroom.
        footprint = 2 * nc_tile * (
            _round_up(h_tile_in, sub) * w_pad
            + _round_up(h_tile_out, sub) * w_out_pad) * itemsize
        vmem_limit = min(56 * _MIB, max(base_vmem_limit, footprint + 2 * _MIB))

        return pl.pallas_call(
            _crop_copy_kernel,
            out_shape=jax.ShapeDtypeStruct((nc, h_out, w_out), x_flat.dtype),
            grid=(nc_steps, h_steps),
            in_specs=[
                # Full-W input block (last dim == array dim => unit-stride
                # DMA); H blocks are either full-H or a multiple of the packed
                # sublane count, so sub-32-bit dtypes need no repack.
                pl.BlockSpec((nc_tile, h_tile_in, w), lambda i, j: (i, j, 0)),
            ],
            out_specs=pl.BlockSpec(
                (nc_tile, h_tile_out, w_out), lambda i, j: (i, j, 0)),
            compiler_params=pltpu.CompilerParams(
                dimension_semantics=("parallel", "parallel"),
                vmem_limit_bytes=vmem_limit,
            ),
            cost_estimate=cost,
        )(x_flat)


if __name__ == "__main__":
    key = jax.random.PRNGKey(0)
    x = jax.random.normal(key, (2, 4, 16, 16), dtype=jnp.float32)

    # Even kernel_size -> crop last row/col (VMEM-staged path: tiny W).
    y_even = jax.block_until_ready(SamePad2d(kernel_size=2)(x))
    assert y_even.shape == (2, 4, 15, 15)
    assert jnp.array_equal(y_even, x[:, :, :-1, :-1])

    # Odd kernel_size -> identity (short-circuited, no kernel launch).
    y_odd = jax.block_until_ready(SamePad2d(kernel_size=3)(x))
    assert y_odd.shape == x.shape
    assert jnp.array_equal(y_odd, x)

    # Wider feature map -> exercises the DMA-only HBM->HBM crop path.
    x2 = jax.random.normal(jax.random.PRNGKey(1), (2, 4, 16, 160),
                           dtype=jnp.float32)
    y2 = jax.block_until_ready(SamePad2d(kernel_size=4)(x2))
    assert y2.shape == (2, 4, 15, 159)
    assert jnp.array_equal(y2, x2[:, :, :-1, :-1])

    # Sub-32-bit dtype (bf16) -> packed-sublane-aware VMEM path.
    x3 = jax.random.normal(jax.random.PRNGKey(2), (1, 2, 32, 32),
                           dtype=jnp.bfloat16)
    y3 = jax.block_until_ready(SamePad2d(kernel_size=2)(x3))
    assert y3.shape == (1, 2, 31, 31)
    assert jnp.array_equal(y3, x3[:, :, :-1, :-1])

    print("KERNEL_OK")
</pallas_src>

<mosaic_0001>
module attributes {stable_mosaic.version = 11 : i64} {
  func.func @_crop_copy_kernel(%arg0: i32, %arg1: i32, %arg2: memref<8x16x16xf32, #tpu.memory_space<vmem>>, %arg3: memref<8x15x15xf32, #tpu.memory_space<vmem>>) attributes {dimension_semantics = [#tpu.dimension_semantics<parallel>, #tpu.dimension_semantics<parallel>], iteration_bounds = array<i64: 1, 1>, scalar_prefetch = 0 : i64, scratch_operands = 0 : i64, tpu.core_type = #tpu.core_type<tc>, window_params = [{transform_indices = @transform_0, window_bounds = array<i64: 8, 16, 16>}, {transform_indices = @transform_1, window_bounds = array<i64: 8, 15, 15>}]} {
    %c0 = arith.constant 0 : index
    %c0_0 = arith.constant 0 : index
    %c0_1 = arith.constant 0 : index
    %0 = vector.load %arg2[%c0, %c0_0, %c0_1] : memref<8x16x16xf32, #tpu.memory_space<vmem>>, vector<8x15x15xf32>
    %c0_2 = arith.constant 0 : index
    %c0_3 = arith.constant 0 : index
    %c0_4 = arith.constant 0 : index
    %1 = vector.load %arg3[%c0_2, %c0_3, %c0_4] : memref<8x15x15xf32, #tpu.memory_space<vmem>>, vector<8x15x15xf32>
    tpu.vector_store %arg3[%c0_2, %c0_3, %c0_4], %0 {strides = array<i32>} : memref<8x15x15xf32, #tpu.memory_space<vmem>>, vector<8x15x15xf32>,
    return
  }
  func.func @transform_0(%arg0: i32, %arg1: i32) -> (i32, i32, i32) {
    %c0_i32 = arith.constant 0 : i32
    %c0_i32_0 = arith.constant 0 : i32
    return %arg0, %arg1, %c0_i32 : i32, i32, i32
  }
  func.func @transform_1(%arg0: i32, %arg1: i32) -> (i32, i32, i32) {
    %c0_i32 = arith.constant 0 : i32
    %c0_i32_0 = arith.constant 0 : i32
    return %arg0, %arg1, %c0_i32 : i32, i32, i32
  }
}

</mosaic_0001>

<llo_original>
// kernel: tpu_custom_call.1
$region0: #{tpu_custom_call.1}
  #allocation0 [shape = 'u32[]', space=smem, size = 0x4, offset = 0x4, fixed_abs, tag = 'smem constant byte address 0x4 - core index']
  #allocation1 [shape = 'u32[144,128]{1,0:T(1,128)}', space=vmem, size = 0x12000, scoped, tag = 'internal scratch']
  %s0 = inlined_call_operand.hbm [shape: f32[8,16,16], index: 0, kind: input, shape index: {}]
  %s1 = inlined_call_operand.vmem [shape: f32[8,15,15], index: 1, kind: output, shape index: {}]
  %s2 = sld [smem:[#allocation0]]
  $region18: #{tpu_custom_call.1} parent=0
    _
  %s4 = ssub.s32 1, %s2
  %s5 = scalar_select 0, %s4, %s2
  $region1: #{tpu_custom_call.1} parent=0
    #allocation2 [shape = 'u8[65536]{0}', space=vmem, size = 0x10000, scoped, tag = 'input window, operand 0, single buffered']
    #allocation3 [shape = 's32[1]{0}', space=sflag, size = 0x4, scoped, tag = 'scoped memory for tpu_custom_call.1']
    %6 = vsyncpa [#allocation3], 0
    // Predicated region
    $region2: #{tpu_custom_call.1} parent=1 // pred_check
      _
    $region3: #{tpu_custom_call.1} parent=1 // pred_check_branch
      %8 = sbr.rel (0) target = $region5
    $region4: #{tpu_custom_call.1} parent=1 // pred_region
      %s10 = ssub.s32 2048, 2048
      %11 = vsyncadd [#allocation3], %s10
      %s12 = sshll.u32 [#allocation2], 4
      %s13 = int_to_ptr.vmem [resolvable:$true] %s12
      %18 = dma.hbm_to_vmem [thread:$0]  %s0, 2048, %s13, [#allocation3], 128, 128, 8
    $region5: #{tpu_custom_call.1} parent=1 // pred_fallthru
      _
    // Predicated region
    $region6: #{tpu_custom_call.1} parent=1 // pred_check
      _
    $region7: #{tpu_custom_call.1} parent=1 // pred_check_branch
      %20 = sbr.rel (0) target = $region9
    $region8: #{tpu_custom_call.1} parent=1 // pred_region
      %21 = dma.done [#allocation3], 2048
    $region9: #{tpu_custom_call.1} parent=1 // pred_fallthru
      _
    %v22 = vld [vmem:[#allocation2] sm:$0xff]
    %v23 = vld [vmem:[#allocation2 + $0x8] sm:$0x7f]
    %v24 = vld [vmem:[#allocation2 + $0x10] sm:$0xff]
    %v25 = vld [vmem:[#allocation2 + $0x18] sm:$0x7f]
    %v26 = vld [vmem:[#allocation2 + $0x20] sm:$0xff]
    %v27 = vld [vmem:[#allocation2 + $0x28] sm:$0x7f]
    %v28 = vld [vmem:[#allocation2 + $0x30] sm:$0xff]
    %v29 = vld [vmem:[#allocation2 + $0x38] sm:$0x7f]
    %v30 = vld [vmem:[#allocation2 + $0x40] sm:$0xff]
    %v31 = vld [vmem:[#allocation2 + $0x48] sm:$0x7f]
    %v32 = vld [vmem:[#allocation2 + $0x50] sm:$0xff]
    %v33 = vld [vmem:[#allocation2 + $0x58] sm:$0x7f]
    %v34 = vld [vmem:[#allocation2 + $0x60] sm:$0xff]
    %v35 = vld [vmem:[#allocation2 + $0x68] sm:$0x7f]
    %v36 = vld [vmem:[#allocation2 + $0x70] sm:$0xff]
    %v37 = vld [vmem:[#allocation2 + $0x78] sm:$0x7f]
    %vm38 = vcmask 121856
    %39 = vst.msk [vmem:[%s1] sm:$0xff] %vm38, %v22
    %vm40 = vcmask 120832
    %41 = vst.msk [vmem:[%s1 + $0x8] sm:$0x7f] %vm40, %v23
    %42 = vst.msk [vmem:[%s1 + $0x10] sm:$0xff] %vm38, %v24
    %43 = vst.msk [vmem:[%s1 + $0x18] sm:$0x7f] %vm40, %v25
    %44 = vst.msk [vmem:[%s1 + $0x20] sm:$0xff] %vm38, %v26
    %45 = vst.msk [vmem:[%s1 + $0x28] sm:$0x7f] %vm40, %v27
    %46 = vst.msk [vmem:[%s1 + $0x30] sm:$0xff] %vm38, %v28
    %47 = vst.msk [vmem:[%s1 + $0x38] sm:$0x7f] %vm40, %v29
    %48 = vst.msk [vmem:[%s1 + $0x40] sm:$0xff] %vm38, %v30
    %49 = vst.msk [vmem:[%s1 + $0x48] sm:$0x7f] %vm40, %v31
    %50 = vst.msk [vmem:[%s1 + $0x50] sm:$0xff] %vm38, %v32
    %51 = vst.msk [vmem:[%s1 + $0x58] sm:$0x7f] %vm40, %v33
    %52 = vst.msk [vmem:[%s1 + $0x60] sm:$0xff] %vm38, %v34
    %53 = vst.msk [vmem:[%s1 + $0x68] sm:$0x7f] %vm40, %v35
    %54 = vst.msk [vmem:[%s1 + $0x70] sm:$0xff] %vm38, %v36
    %55 = vst.msk [vmem:[%s1 + $0x78] sm:$0x7f] %vm40, %v37
    // Predicated region
    $region10: #{tpu_custom_call.1} parent=1 // pred_check
      _
    $region11: #{tpu_custom_call.1} parent=1 // pred_check_branch
      %57 = sbr.rel (0) target = $region13
    $region12: #{tpu_custom_call.1} parent=1 // pred_region
      _
    $region13: #{tpu_custom_call.1} parent=1 // pred_fallthru
      _
    // Predicated region
    $region14: #{tpu_custom_call.1} parent=1 // pred_check
      _
    $region15: #{tpu_custom_call.1} parent=1 // pred_check_branch
      %59 = sbr.rel (0) target = $region17
    $region16: #{tpu_custom_call.1} parent=1 // pred_region
      _
    $region17: #{tpu_custom_call.1} parent=1 // pred_fallthru
      _
    %60 = vsyncpa [#allocation3], 1

</llo_original>
